<compile_context>
chip_gen: v6e
topology: v6e:2x2x1
jax: 0.10.0
libtpu: 0.0.40
codegen_flags: <defaults>
</compile_context>

<pallas_src>
import functools

import jax
import jax.numpy as jnp
from jax.experimental import pallas as pl
from jax.experimental.pallas import tpu as pltpu


def _round_up(x, m):
    return (x + m - 1) // m * m


def visual_embedding_kernel(feats_ref, add_ref, wf_ref, lnw_ref, out_ref, *, eps):
    # feat_embedding = feats @ W_feat  (MXU; operands stay in storage dtype,
    # f32 accumulation via preferred_element_type).
    feat_emb = jnp.dot(feats_ref[...], wf_ref[...],
                       preferred_element_type=jnp.float32)          # [TN, D]

    # add_ref folds abs_vis_pos_embedding + b_feat + b_pos + img_order_emb +
    # obj_order_emb (computed once per row in the wrapper).
    vis = feat_emb + add_ref[...].astype(jnp.float32)

    # TODO(synk): dropout is a no-op here (eval mode); training-mode dropout
    # would use pltpu.prng_seed / pltpu.stateful_bernoulli.

    # T5LayerNorm: x * rsqrt(mean(x^2) + eps) * w  (no mean subtraction/bias),
    # kept in f32.
    var = jnp.mean(vis * vis, axis=-1, keepdims=True)
    vis = vis * jax.lax.rsqrt(var + eps)
    out_ref[...] = (lnw_ref[...] * vis).astype(out_ref.dtype)


def visual_embedding(feats, pos, params, img_order_ids=None, obj_order_ids=None,
                     *, tile_n=None, eps=1e-8, out_dtype=None,
                     add_dtype=jnp.float32):
    N, f_in = feats.shape
    d_model = params["w_feat"].shape[1]
    feat_dim = params["w_pos"].shape[1]
    assert d_model == feat_dim, "module requires d_model == feat_dim"
    out_dtype = feats.dtype if out_dtype is None else out_dtype

    # ---- glue: order-embedding lookups + pos-linear + bias folding (tiny JAX) ----
    if img_order_ids is None:
        img_ids = jnp.zeros((N,), jnp.int32)
    else:
        # PyTorch: ones(N) * img_order_ids -> one image id broadcast to all
        # objects (also handles a per-object vector if one is supplied).
        img_ids = jnp.broadcast_to(jnp.asarray(img_order_ids, jnp.int32), (N,))
    img_emb = jnp.take(params["img_table"], img_ids, axis=0)        # [N, D]

    if obj_order_ids is None:
        if N > params["obj_table"].shape[0]:
            raise ValueError(
                f"default obj_order_ids=arange(N) needs N <= n_objs "
                f"({params['obj_table'].shape[0]}); got N={N}. Pass obj_order_ids.")
        obj_emb = params["obj_table"][:N]                            # ids = arange(N)
    else:
        obj_emb = jnp.take(params["obj_table"],
                           jnp.asarray(obj_order_ids, jnp.int32), axis=0)

    # Fold the K=5 position Linear into the per-row add (free; fuses in XLA).
    posf = pos.astype(jnp.float32)                                   # [N, 4]
    area = (posf[:, 3:4] - posf[:, 2:3]) * (posf[:, 1:2] - posf[:, 0:1])
    pos5 = jnp.concatenate([posf, area], axis=1)                     # [N, 5]
    abs_emb = pos5 @ params["w_pos"].astype(jnp.float32)             # [N, D]

    add_emb = (abs_emb
               + img_emb.astype(jnp.float32) + obj_emb.astype(jnp.float32)
               + params["b_feat"].astype(jnp.float32)[None, :]
               + params["b_pos"].astype(jnp.float32)[None, :]).astype(add_dtype)

    ln_w = params["ln_weight"].astype(jnp.float32).reshape(1, d_model)
    w_feat = params["w_feat"]                                        # storage dtype

    # ---- row tiling: no padding copies; Pallas masks the boundary block ----
    sub_min = 32                       # sublane multiple valid for f32/bf16/int8
    cap = 512                          # ~13 MiB footprint at 2048->768 shapes
    if tile_n is None:
        if N <= 2 * sub_min:
            tile_n = _round_up(max(N, 1), sub_min)        # single small tile
        else:
            # >= 2 grid steps so both v7x TensorCores get work; cap at 512 rows.
            tile_n = min(cap, _round_up(pl.cdiv(N, 2), sub_min))
    else:
        tile_n = _round_up(tile_n, sub_min)
    grid_n = pl.cdiv(N, tile_n)

    # Explicit VMEM budget (double-buffered row streams + resident weights).
    def _bytes(dt):
        return jnp.dtype(dt).itemsize
    vmem_bytes = (2 * tile_n * f_in * _bytes(feats.dtype)        # feats
                  + 2 * tile_n * d_model * _bytes(add_dtype)     # folded add
                  + 2 * tile_n * d_model * _bytes(out_dtype)     # output
                  + f_in * d_model * _bytes(w_feat.dtype)        # W_feat (Buffered(1))
                  + d_model * 4)                                 # ln weight
    vmem_limit = min(int(vmem_bytes * 1.5) + (2 << 20), 64 << 20)

    const = dict(pipeline_mode=pl.Buffered(1))   # resident, single VMEM buffer
    kernel = functools.partial(visual_embedding_kernel, eps=eps)
    out = pl.pallas_call(
        kernel,
        out_shape=jax.ShapeDtypeStruct((N, d_model), out_dtype),
        grid_spec=pltpu.PrefetchScalarGridSpec(
            num_scalar_prefetch=0,
            grid=(grid_n,),
            in_specs=[
                pl.BlockSpec((tile_n, f_in), lambda i: (i, 0)),            # feats
                pl.BlockSpec((tile_n, d_model), lambda i: (i, 0)),         # folded adds
                pl.BlockSpec((f_in, d_model), lambda i: (0, 0), **const),  # W_feat
                pl.BlockSpec((1, d_model), lambda i: (0, 0), **const),     # ln weight
            ],
            out_specs=pl.BlockSpec((tile_n, d_model), lambda i: (i, 0)),
        ),
        compiler_params=pltpu.CompilerParams(
            dimension_semantics=("parallel",),
            vmem_limit_bytes=vmem_limit),
    )(feats, add_emb, w_feat, ln_w)
    return out


def reference(feats, pos, params, img_order_ids=None, obj_order_ids=None, eps=1e-8):
    """Pure-JAX reference mirroring the PyTorch forward (eval mode)."""
    N = feats.shape[0]
    feat_emb = (jnp.dot(feats, params["w_feat"], preferred_element_type=jnp.float32)
                + params["b_feat"].astype(jnp.float32))
    posf = pos.astype(jnp.float32)
    area = (posf[:, 3] - posf[:, 2]) * (posf[:, 1] - posf[:, 0])
    pos5 = jnp.concatenate([posf, area[:, None]], axis=1)
    abs_emb = (pos5 @ params["w_pos"].astype(jnp.float32)
               + params["b_pos"].astype(jnp.float32))
    if img_order_ids is None:
        img_ids = jnp.zeros((N,), jnp.int32)
    else:
        img_ids = jnp.broadcast_to(jnp.asarray(img_order_ids, jnp.int32), (N,))
    img_emb = jnp.take(params["img_table"], img_ids, axis=0)
    if obj_order_ids is None:
        obj_ids = jnp.arange(N)
    else:
        obj_ids = jnp.asarray(obj_order_ids, jnp.int32)
    obj_emb = jnp.take(params["obj_table"], obj_ids, axis=0)
    vis = feat_emb + abs_emb + img_emb + obj_emb
    var = jnp.mean(vis * vis, axis=-1, keepdims=True)
    return params["ln_weight"] * (vis * jax.lax.rsqrt(var + eps))


if __name__ == "__main__":
    # Small synthetic shapes consistent with the module (scaled down from
    # 2048-dim features / 768-dim model): 36 objects, d_model == feat_dim,
    # 36 object-order slots, 16 image-order slots.
    N, F_IN, D_MODEL = 36, 256, 128
    N_OBJS, N_IMAGES = 36, 16

    key = jax.random.PRNGKey(0)
    ks = jax.random.split(key, 10)
    params = {
        # bf16 weights/activations into the (memory-bound) matmul; the kernel
        # accumulates in f32 via preferred_element_type.
        "w_feat": (jax.random.normal(ks[0], (F_IN, D_MODEL), jnp.float32) * 0.02
                   ).astype(jnp.bfloat16),
        "b_feat": jax.random.normal(ks[1], (D_MODEL,), jnp.float32) * 0.02,
        "w_pos": jax.random.normal(ks[2], (5, D_MODEL), jnp.float32) * 0.02,
        "b_pos": jax.random.normal(ks[3], (D_MODEL,), jnp.float32) * 0.02,
        "img_table": jax.random.normal(ks[4], (N_IMAGES, D_MODEL), jnp.float32) * 0.02,
        "obj_table": jax.random.normal(ks[5], (N_OBJS, D_MODEL), jnp.float32) * 0.02,
        "ln_weight": jnp.ones((D_MODEL,), jnp.float32),
    }

    feats = jax.random.normal(ks[6], (N, F_IN), jnp.float32).astype(jnp.bfloat16)
    pos = jax.random.uniform(ks[7], (N, 4), jnp.float32)   # (x1, x2, y1, y2)

    # Default path: img_order_ids=None (zeros), obj_order_ids=None (arange).
    out = jax.block_until_ready(
        visual_embedding(feats, pos, params, out_dtype=jnp.float32))
    ref = reference(feats, pos, params)
    assert out.shape == (N, D_MODEL)
    assert jnp.allclose(out, ref, atol=2e-3, rtol=2e-3), "mismatch (default ids)"

    # Explicit scalar image-order id (PyTorch broadcasts it to all N objects).
    out2 = jax.block_until_ready(
        visual_embedding(feats, pos, params, img_order_ids=3, out_dtype=jnp.float32))
    ref2 = reference(feats, pos, params, img_order_ids=3)
    assert jnp.allclose(out2, ref2, atol=2e-3, rtol=2e-3), "mismatch (img_order_ids)"

    # Batched N not divisible by the tile: exercises the cdiv grid + masked
    # boundary block (multi-step parallel grid, no wrapper-side padding).
    N_BIG = 100
    feats_b = jax.random.normal(ks[8], (N_BIG, F_IN), jnp.float32).astype(jnp.bfloat16)
    pos_b = jax.random.uniform(ks[9], (N_BIG, 4), jnp.float32)
    obj_ids_b = jnp.arange(N_BIG, dtype=jnp.int32) % N_OBJS
    out3 = jax.block_until_ready(
        visual_embedding(feats_b, pos_b, params, img_order_ids=2,
                         obj_order_ids=obj_ids_b, out_dtype=jnp.float32))
    ref3 = reference(feats_b, pos_b, params, img_order_ids=2, obj_order_ids=obj_ids_b)
    assert out3.shape == (N_BIG, D_MODEL)
    assert jnp.allclose(out3, ref3, atol=2e-3, rtol=2e-3), "mismatch (batched N)"

    print("KERNEL_OK")
</pallas_src>

<mosaic_0001>
module attributes {stable_mosaic.version = 11 : i64} {
  func.func @visual_embedding_kernel(%arg0: i32, %arg1: memref<64x256xbf16, #tpu.memory_space<vmem>>, %arg2: memref<64x128xf32, #tpu.memory_space<vmem>>, %arg3: memref<256x128xbf16, #tpu.memory_space<vmem>>, %arg4: memref<1x128xf32, #tpu.memory_space<vmem>>, %arg5: memref<64x128xf32, #tpu.memory_space<vmem>>) attributes {dimension_semantics = [#tpu.dimension_semantics<parallel>], iteration_bounds = array<i64: 1>, scalar_prefetch = 0 : i64, scratch_operands = 0 : i64, tpu.core_type = #tpu.core_type<tc>, window_params = [{transform_indices = @transform_0, window_bounds = array<i64: 64, 256>}, {transform_indices = @transform_1, window_bounds = array<i64: 64, 128>}, {pipeline_mode = #tpu.pipeline_mode<synchronous>, transform_indices = @transform_2, window_bounds = array<i64: 256, 128>}, {pipeline_mode = #tpu.pipeline_mode<synchronous>, transform_indices = @transform_3, window_bounds = array<i64: 1, 128>}, {transform_indices = @transform_4, window_bounds = array<i64: 64, 128>}]} {
    %c0 = arith.constant 0 : index
    %c0_0 = arith.constant 0 : index
    %0 = vector.load %arg1[%c0, %c0_0] : memref<64x256xbf16, #tpu.memory_space<vmem>>, vector<64x256xbf16>
    %c0_1 = arith.constant 0 : index
    %c0_2 = arith.constant 0 : index
    %1 = vector.load %arg3[%c0_1, %c0_2] : memref<256x128xbf16, #tpu.memory_space<vmem>>, vector<256x128xbf16>
    %cst = arith.constant dense<0.000000e+00> : vector<64x128xf32>
    %2 = tpu.matmul %0, %1, %cst {dimension_numbers = #tpu.dot_dimension_numbers<[1], [0], [0], [1], [0, 0, 1, 1], [], []>} : vector<64x256xbf16>, vector<256x128xbf16>, vector<64x128xf32> -> vector<64x128xf32>
    %c0_3 = arith.constant 0 : index
    %c0_4 = arith.constant 0 : index
    %3 = vector.load %arg2[%c0_3, %c0_4] : memref<64x128xf32, #tpu.memory_space<vmem>>, vector<64x128xf32>
    %4 = arith.addf %2, %3 : vector<64x128xf32>
    %5 = arith.mulf %4, %4 : vector<64x128xf32>
    %cst_5 = arith.constant dense<0.000000e+00> : vector<64xf32>
    %6 = vector.multi_reduction <add>, %5, %cst_5 [1] : vector<64x128xf32> to vector<64xf32>
    %7 = vector.shape_cast %6 : vector<64xf32> to vector<64x1xf32>
    %cst_6 = arith.constant 1.280000e+02 : f32
    %8 = vector.broadcast %cst_6 : f32 to vector<64x1xf32>
    %9 = arith.divf %7, %8 : vector<64x1xf32>
    %cst_7 = arith.constant 9.99999993E-9 : f32
    %10 = vector.broadcast %cst_7 : f32 to vector<64x1xf32>
    %11 = arith.addf %9, %10 : vector<64x1xf32>
    %12 = math.rsqrt %11 : vector<64x1xf32>
    %13 = vector.broadcast %12 : vector<64x1xf32> to vector<64x128xf32>
    %14 = arith.mulf %4, %13 : vector<64x128xf32>
    %c0_8 = arith.constant 0 : index
    %c0_9 = arith.constant 0 : index
    %15 = vector.load %arg4[%c0_8, %c0_9] : memref<1x128xf32, #tpu.memory_space<vmem>>, vector<1x128xf32>
    %16 = vector.broadcast %15 : vector<1x128xf32> to vector<64x128xf32>
    %17 = arith.mulf %16, %14 : vector<64x128xf32>
    %c0_10 = arith.constant 0 : index
    %c0_11 = arith.constant 0 : index
    %18 = vector.load %arg5[%c0_10, %c0_11] : memref<64x128xf32, #tpu.memory_space<vmem>>, vector<64x128xf32>
    tpu.vector_store %arg5[%c0_10, %c0_11], %17 {strides = array<i32>} : memref<64x128xf32, #tpu.memory_space<vmem>>, vector<64x128xf32>,
    return
  }
  func.func @transform_0(%arg0: i32) -> (i32, i32) {
    %c0_i32 = arith.constant 0 : i32
    %c0_i32_0 = arith.constant 0 : i32
    return %arg0, %c0_i32 : i32, i32
  }
  func.func @transform_1(%arg0: i32) -> (i32, i32) {
    %c0_i32 = arith.constant 0 : i32
    %c0_i32_0 = arith.constant 0 : i32
    return %arg0, %c0_i32 : i32, i32
  }
  func.func @transform_2(%arg0: i32) -> (i32, i32) {
    %c0_i32 = arith.constant 0 : i32
    %c0_i32_0 = arith.constant 0 : i32
    %c0_i32_1 = arith.constant 0 : i32
    return %c0_i32, %c0_i32_0 : i32, i32
  }
  func.func @transform_3(%arg0: i32) -> (i32, i32) {
    %c0_i32 = arith.constant 0 : i32
    %c0_i32_0 = arith.constant 0 : i32
    %c0_i32_1 = arith.constant 0 : i32
    return %c0_i32, %c0_i32_0 : i32, i32
  }
  func.func @transform_4(%arg0: i32) -> (i32, i32) {
    %c0_i32 = arith.constant 0 : i32
    %c0_i32_0 = arith.constant 0 : i32
    return %arg0, %c0_i32 : i32, i32
  }
}

</mosaic_0001>

<llo_original>
// kernel: tpu_custom_call.1
$region0: #{tpu_custom_call.1}
  #allocation0 [shape = 'u32[]', space=smem, size = 0x4, offset = 0x4, fixed_abs, tag = 'smem constant byte address 0x4 - core index']
  #allocation1 [shape = 'u32[144,128]{1,0:T(1,128)}', space=vmem, size = 0x12000, scoped, tag = 'internal scratch']
  %s0 = inlined_call_operand.hbm [shape: bf16[36,256], index: 0, kind: input, shape index: {}]
  %s1 = inlined_call_operand.hbm [shape: f32[36,128], index: 1, kind: input, shape index: {}]
  %s2 = inlined_call_operand.hbm [shape: bf16[256,128], index: 2, kind: input, shape index: {}]
  %s3 = inlined_call_operand.vmem [shape: f32[1,128], index: 3, kind: input, shape index: {}]
  %s4 = inlined_call_operand.hbm [shape: f32[36,128], index: 4, kind: output, shape index: {}]
  %s5 = sld [smem:[#allocation0]]
  $region38: #{tpu_custom_call.1} parent=0
    _
  %s7 = ssub.s32 1, %s5
  %s8 = scalar_select 0, %s7, %s5
  $region1: #{tpu_custom_call.1} parent=0
    #allocation2 [shape = 'u8[32768]{0}', space=vmem, size = 0x8000, scoped, tag = 'input window, operand 0, single buffered']
    #allocation3 [shape = 's32[1]{0}', space=sflag, size = 0x4, scoped, tag = 'scoped memory for tpu_custom_call.1']
    #allocation4 [shape = 's32[1]{0}', space=sflag, size = 0x4, scoped, tag = 'scoped memory for tpu_custom_call.1']
    #allocation5 [shape = 'u8[32768]{0}', space=vmem, size = 0x8000, scoped, tag = 'input window, operand 1, single buffered']
    #allocation6 [shape = 's32[1]{0}', space=sflag, size = 0x4, scoped, tag = 'scoped memory for tpu_custom_call.1']
    #allocation7 [shape = 'u8[65536]{0}', space=vmem, size = 0x10000, scoped, tag = 'input window, operand 2, single buffered']
    #allocation8 [shape = 'u8[32768]{0}', space=vmem, size = 0x8000, scoped, tag = 'output window, operand 0, single buffered']
    %9 = vsyncpa [#allocation3], 0
    %10 = vsyncpa [#allocation6], 0
    %11 = vsyncpa [#allocation4], 0
    // Predicated region
    $region2: #{tpu_custom_call.1} parent=1 // pred_check
      _
    $region3: #{tpu_custom_call.1} parent=1 // pred_check_branch
      %13 = sbr.rel (0) target = $region5
    $region4: #{tpu_custom_call.1} parent=1 // pred_region
      %s15 = ssub.s32 1024, 640
      %16 = vsyncadd [#allocation3], %s15
      %s17 = sshll.u32 [#allocation2], 4
      %s18 = int_to_ptr.vmem [resolvable:$true] %s17
      %23 = dma.hbm_to_vmem [thread:$0]  %s0, 640, %s18, [#allocation3], 128, 128, 8
    $region5: #{tpu_custom_call.1} parent=1 // pred_fallthru
      _
    // Predicated region
    $region6: #{tpu_custom_call.1} parent=1 // pred_check
      _
    $region7: #{tpu_custom_call.1} parent=1 // pred_check_branch
      %25 = sbr.rel (0) target = $region9
    $region8: #{tpu_custom_call.1} parent=1 // pred_region
      %s27 = ssub.s32 1024, 640
      %28 = vsyncadd [#allocation6], %s27
      %s29 = sshll.u32 [#allocation5], 4
      %s30 = int_to_ptr.vmem [resolvable:$true] %s29
      %35 = dma.hbm_to_vmem [thread:$0]  %s1, 640, %s30, [#allocation6], 128, 128, 8
    $region9: #{tpu_custom_call.1} parent=1 // pred_fallthru
      _
    // Predicated region
    $region10: #{tpu_custom_call.1} parent=1 // pred_check
      _
    $region11: #{tpu_custom_call.1} parent=1 // pred_check_branch
      %37 = sbr.rel (0) target = $region13
    $region12: #{tpu_custom_call.1} parent=1 // pred_region
      %s39 = ssub.s32 2048, 2048
      %40 = vsyncadd [#allocation6], %s39
      %s41 = sshll.u32 [#allocation7], 4
      %s42 = int_to_ptr.vmem [resolvable:$true] %s41
      %47 = dma.hbm_to_vmem [thread:$0]  %s2, 2048, %s42, [#allocation6], 64, 64, 4
    $region13: #{tpu_custom_call.1} parent=1 // pred_fallthru
      _
    // Predicated region
    $region14: #{tpu_custom_call.1} parent=1 // pred_check
      _
    $region15: #{tpu_custom_call.1} parent=1 // pred_check_branch
      %49 = sbr.rel (0) target = $region17
    $region16: #{tpu_custom_call.1} parent=1 // pred_region
      _
    $region17: #{tpu_custom_call.1} parent=1 // pred_fallthru
      _
    // Predicated region
    $region18: #{tpu_custom_call.1} parent=1 // pred_check
      _
    $region19: #{tpu_custom_call.1} parent=1 // pred_check_branch
      %51 = sbr.rel (0) target = $region21
    $region20: #{tpu_custom_call.1} parent=1 // pred_region
      %52 = dma.done [#allocation3], 1024
    $region21: #{tpu_custom_call.1} parent=1 // pred_fallthru
      _
    // Predicated region
    $region22: #{tpu_custom_call.1} parent=1 // pred_check
      _
    $region23: #{tpu_custom_call.1} parent=1 // pred_check_branch
      %54 = sbr.rel (0) target = $region25
    $region24: #{tpu_custom_call.1} parent=1 // pred_region
      %55 = dma.done [#allocation6], 1024
    $region25: #{tpu_custom_call.1} parent=1 // pred_fallthru
      _
    // Predicated region
    $region26: #{tpu_custom_call.1} parent=1 // pred_check
      _
    $region27: #{tpu_custom_call.1} parent=1 // pred_check_branch
      %57 = sbr.rel (0) target = $region29
    $region28: #{tpu_custom_call.1} parent=1 // pred_region
      %58 = dma.done [#allocation6], 2048
    $region29: #{tpu_custom_call.1} parent=1 // pred_fallthru
      _
    %v60 = vld [vmem:[#allocation2] sm:$0xff]
    %v61 = vld [vmem:[#allocation2 + $0x8] sm:$0xff]
    %v62 = vld [vmem:[#allocation2 + $0x10] sm:$0xff]
    %v63 = vld [vmem:[#allocation2 + $0x18] sm:$0xff]
    %v64 = vld [vmem:[#allocation2 + $0x20] sm:$0xff]
    %v65 = vld [vmem:[#allocation2 + $0x28] sm:$0xff]
    %v66 = vld [vmem:[#allocation2 + $0x30] sm:$0xff]
    %v67 = vld [vmem:[#allocation2 + $0x38] sm:$0xff]
    %v68 = vld [vmem:[#allocation7] sm:$0xf]
    %v69 = vld [vmem:[#allocation7 + $0x4] sm:$0xf]
    %v70 = vld [vmem:[#allocation7 + $0x8] sm:$0xf]
    %v71 = vld [vmem:[#allocation7 + $0xc] sm:$0xf]
    %v72 = vld [vmem:[#allocation7 + $0x10] sm:$0xf]
    %v73 = vld [vmem:[#allocation7 + $0x14] sm:$0xf]
    %v74 = vld [vmem:[#allocation7 + $0x18] sm:$0xf]
    %v75 = vld [vmem:[#allocation7 + $0x1c] sm:$0xf]
    %v76 = vld [vmem:[#allocation7 + $0x20] sm:$0xf]
    %v77 = vld [vmem:[#allocation7 + $0x24] sm:$0xf]
    %v78 = vld [vmem:[#allocation7 + $0x28] sm:$0xf]
    %v79 = vld [vmem:[#allocation7 + $0x2c] sm:$0xf]
    %v80 = vld [vmem:[#allocation7 + $0x30] sm:$0xf]
    %v81 = vld [vmem:[#allocation7 + $0x34] sm:$0xf]
    %v82 = vld [vmem:[#allocation7 + $0x38] sm:$0xf]
    %v83 = vld [vmem:[#allocation7 + $0x3c] sm:$0xf]
    %v84 = vld [vmem:[#allocation7 + $0x40] sm:$0xf]
    %v85 = vld [vmem:[#allocation7 + $0x44] sm:$0xf]
    %v86 = vld [vmem:[#allocation7 + $0x48] sm:$0xf]
    %v87 = vld [vmem:[#allocation7 + $0x4c] sm:$0xf]
    %v88 = vld [vmem:[#allocation7 + $0x50] sm:$0xf]
    %v89 = vld [vmem:[#allocation7 + $0x54] sm:$0xf]
    %v90 = vld [vmem:[#allocation7 + $0x58] sm:$0xf]
    %v91 = vld [vmem:[#allocation7 + $0x5c] sm:$0xf]
    %v92 = vld [vmem:[#allocation7 + $0x60] sm:$0xf]
    %v93 = vld [vmem:[#allocation7 + $0x64] sm:$0xf]
    %v94 = vld [vmem:[#allocation7 + $0x68] sm:$0xf]
    %v95 = vld [vmem:[#allocation7 + $0x6c] sm:$0xf]
    %v96 = vld [vmem:[#allocation7 + $0x70] sm:$0xf]
    %v97 = vld [vmem:[#allocation7 + $0x74] sm:$0xf]
    %v98 = vld [vmem:[#allocation7 + $0x78] sm:$0xf]
    %v99 = vld [vmem:[#allocation7 + $0x7c] sm:$0xf]
    %v100 = vld [vmem:[#allocation5] sm:$0xff]
    %v101 = vld [vmem:[#allocation5 + $0x8] sm:$0xff]
    %v102 = vld [vmem:[#allocation5 + $0x10] sm:$0xff]
    %v103 = vld [vmem:[#allocation5 + $0x18] sm:$0xff]
    %v104 = vld [vmem:[#allocation5 + $0x20] sm:$0xff]
    %v105 = vld [vmem:[#allocation5 + $0x28] sm:$0xff]
    %v106 = vld [vmem:[#allocation5 + $0x30] sm:$0xff]
    %v107 = vld [vmem:[#allocation5 + $0x38] sm:$0xff]
    %v116 = vunpack.c.l.b16 %v60
    %v117 = vunpack.c.h.b16 %v60
    %v118 = vunpack.c.l.b16 %v61
    %v119 = vunpack.c.h.b16 %v61
    %v120 = vunpack.c.l.b16 %v62
    %v121 = vunpack.c.h.b16 %v62
    %v122 = vunpack.c.l.b16 %v63
    %v123 = vunpack.c.h.b16 %v63
    %v124 = vunpack.c.l.b16 %v64
    %v125 = vunpack.c.h.b16 %v64
    %v126 = vunpack.c.l.b16 %v65
    %v127 = vunpack.c.h.b16 %v65
    %v128 = vunpack.c.l.b16 %v66
    %v129 = vunpack.c.h.b16 %v66
    %v130 = vunpack.c.l.b16 %v67
    %v131 = vunpack.c.h.b16 %v67
    %v132 = vpack.c.b16 %v118, %v116
    %v133 = vpack.c.b16 %v119, %v117
    %v134 = vpack.c.b16 %v122, %v120
    %v135 = vpack.c.b16 %v123, %v121
    %v136 = vpack.c.b16 %v126, %v124
    %v137 = vpack.c.b16 %v127, %v125
    %v138 = vpack.c.b16 %v130, %v128
    %v139 = vpack.c.b16 %v131, %v129
    %v180 = vunpack.c.l.b16 %v68
    %v181 = vunpack.c.l.b16 %v69
    %v182 = vunpack.c.l.b16 %v70
    %v183 = vunpack.c.l.b16 %v71
    %v184 = vunpack.c.l.b16 %v72
    %v185 = vunpack.c.l.b16 %v73
    %v186 = vunpack.c.l.b16 %v74
    %v187 = vunpack.c.l.b16 %v75
    %v188 = vunpack.c.l.b16 %v76
    %v189 = vunpack.c.l.b16 %v77
    %v190 = vunpack.c.l.b16 %v78
    %v191 = vunpack.c.l.b16 %v79
    %v192 = vunpack.c.l.b16 %v80
    %v193 = vunpack.c.l.b16 %v81
    %v194 = vunpack.c.l.b16 %v82
    %v195 = vunpack.c.l.b16 %v83
    %v196 = vunpack.c.l.b16 %v84
    %v197 = vunpack.c.l.b16 %v85
    %v198 = vunpack.c.l.b16 %v86
    %v199 = vunpack.c.l.b16 %v87
    %v200 = vunpack.c.l.b16 %v88
    %v201 = vunpack.c.l.b16 %v89
    %v202 = vunpack.c.l.b16 %v90
    %v203 = vunpack.c.l.b16 %v91
    %v204 = vunpack.c.l.b16 %v92
    %v205 = vunpack.c.l.b16 %v93
    %v206 = vunpack.c.l.b16 %v94
    %v207 = vunpack.c.l.b16 %v95
    %v208 = vunpack.c.l.b16 %v96
    %v209 = vunpack.c.l.b16 %v97
    %v210 = vunpack.c.l.b16 %v98
    %v211 = vunpack.c.l.b16 %v99
    %v212 = vpack.c.b16 %v181, %v180
    %v213 = vpack.c.b16 %v183, %v182
    %v214 = vpack.c.b16 %v185, %v184
    %v215 = vpack.c.b16 %v187, %v186
    %v216 = vpack.c.b16 %v189, %v188
    %v217 = vpack.c.b16 %v191, %v190
    %v218 = vpack.c.b16 %v193, %v192
    %v219 = vpack.c.b16 %v195, %v194
    %v220 = vpack.c.b16 %v197, %v196
    %v221 = vpack.c.b16 %v199, %v198
    %v222 = vpack.c.b16 %v201, %v200
    %v223 = vpack.c.b16 %v203, %v202
    %v224 = vpack.c.b16 %v205, %v204
    %v225 = vpack.c.b16 %v207, %v206
    %v226 = vpack.c.b16 %v209, %v208
    %v227 = vpack.c.b16 %v211, %v210
    %244 = vmatprep.subr.bf16.mxu0 0
    %245 = vmatpush1.bf16.msra.mxu0 %v219
    %246 = vmatprep.subr.bf16.mxu0 0
    %247 = vmatpush1.bf16.msra.mxu0 %v218
    %248 = vmatprep.subr.bf16.mxu0 0
    %249 = vmatpush1.bf16.msra.mxu0 %v217
    %250 = vmatprep.subr.bf16.mxu0 0
    %251 = vmatpush1.bf16.msra.mxu0 %v216
    %252 = vmatprep.subr.bf16.mxu0 0
    %253 = vmatpush1.bf16.msra.mxu0 %v215
    %254 = vmatprep.subr.bf16.mxu0 0
    %255 = vmatpush1.bf16.msra.mxu0 %v214
    %256 = vmatprep.subr.bf16.mxu0 0
    %257 = vmatpush1.bf16.msra.mxu0 %v213
    %258 = vmatprep.subr.bf16.mxu0 0
    %259 = vmatpush1.bf16.msra.mxu0 %v212
    %260 = vmatprep.subr.bf16.mxu0 0
    %261 = vmatpush2.bf16.msra.mxu0 %v227
    %262 = vmatprep.subr.bf16.mxu0 0
    %263 = vmatpush2.bf16.msra.mxu0 %v226
    %264 = vmatprep.subr.bf16.mxu0 0
    %265 = vmatpush2.bf16.msra.mxu0 %v225
    %266 = vmatprep.subr.bf16.mxu0 0
    %267 = vmatpush2.bf16.msra.mxu0 %v224
    %268 = vmatprep.subr.bf16.mxu0 0
    %269 = vmatpush2.bf16.msra.mxu0 %v223
    %270 = vmatprep.subr.bf16.mxu0 0
    %271 = vmatpush2.bf16.msra.mxu0 %v222
    %272 = vmatprep.subr.bf16.mxu0 0
    %273 = vmatpush2.bf16.msra.mxu0 %v221
    %274 = vmatprep.subr.bf16.mxu0 0
    %275 = vmatpush2.bf16.msra.mxu0 %v220
    %276 = vmatprep.mubr.bf16.mxu0 %v133
    %277 = vmatmul.mubr.bf16.gmra.mxu0 %v132
    %v278 = vpop.f32.mrf.mxu0
    %v279 = vadd.f32 %v100, %v278
    %v280 = vpop.f32.mrf.mxu0
    %v281 = vpop.f32.mrf.mxu0
    %v282 = vadd.f32 %v101, %v281
    %v283 = vpop.f32.mrf.mxu0
    %284 = vmatprep.mubr.bf16.mxu0 %v135
    %285 = vmatmul.mubr.bf16.gmra.mxu0 %v134
    %v286 = vpop.f32.mrf.mxu0
    %v287 = vadd.f32 %v102, %v286
    %v288 = vpop.f32.mrf.mxu0
    %v289 = vpop.f32.mrf.mxu0
    %v290 = vadd.f32 %v103, %v289
    %v291 = vpop.f32.mrf.mxu0
    %292 = vmatprep.mubr.bf16.mxu0 %v137
    %293 = vmatmul.mubr.bf16.gmra.mxu0 %v136
    %v294 = vpop.f32.mrf.mxu0
    %v295 = vadd.f32 %v104, %v294
    %v296 = vpop.f32.mrf.mxu0
    %v297 = vpop.f32.mrf.mxu0
    %v298 = vadd.f32 %v105, %v297
    %v299 = vpop.f32.mrf.mxu0
    %300 = vmatprep.mubr.bf16.mxu0 %v139
    %301 = vmatmul.mubr.bf16.gmra.mxu0 %v138
    %v302 = vpop.f32.mrf.mxu0
    %v303 = vadd.f32 %v106, %v302
    %v304 = vpop.f32.mrf.mxu0
    %v305 = vpop.f32.mrf.mxu0
    %v306 = vadd.f32 %v107, %v305
    %v307 = vpop.f32.mrf.mxu0
    %308 = vdwg.mxu0
    %v309 = vmul.f32 %v279, %v279
    %v310 = vmul.f32 %v282, %v282
    %v311 = vmul.f32 %v287, %v287
    %v312 = vmul.f32 %v290, %v290
    %v313 = vmul.f32 %v295, %v295
    %v314 = vmul.f32 %v298, %v298
    %v315 = vmul.f32 %v303, %v303
    %v316 = vmul.f32 %v306, %v306
    %317 = vadd.xlane.f32.xlu0 %v309
    %v318 = vpop.xlane.xlu0 %317
    %319 = vadd.xlane.f32.xlu0 %v310
    %v320 = vpop.xlane.xlu0 %319
    %321 = vadd.xlane.f32.xlu0 %v311
    %v322 = vpop.xlane.xlu0 %321
    %323 = vadd.xlane.f32.xlu0 %v312
    %v324 = vpop.xlane.xlu0 %323
    %325 = vadd.xlane.f32.xlu0 %v313
    %v326 = vpop.xlane.xlu0 %325
    %327 = vadd.xlane.f32.xlu0 %v314
    %v328 = vpop.xlane.xlu0 %327
    %329 = vadd.xlane.f32.xlu0 %v315
    %v330 = vpop.xlane.xlu0 %329
    %331 = vadd.xlane.f32.xlu0 %v316
    %v332 = vpop.xlane.xlu0 %331
    %v333 = vrcp.pop 128.0
    %v334 = vmul.f32 %v318, %v333
    %v335 = vmul.f32 %v320, %v333
    %v336 = vmul.f32 %v322, %v333
    %v337 = vmul.f32 %v324, %v333
    %v338 = vmul.f32 %v326, %v333
    %v339 = vmul.f32 %v328, %v333
    %v340 = vmul.f32 %v330, %v333
    %v341 = vmul.f32 %v332, %v333
    %v342 = vadd.f32 %v334, 1e-08
    %v343 = vadd.f32 %v335, 1e-08
    %v344 = vadd.f32 %v336, 1e-08
    %v345 = vadd.f32 %v337, 1e-08
    %v346 = vadd.f32 %v338, 1e-08
    %v347 = vadd.f32 %v339, 1e-08
    %v348 = vadd.f32 %v340, 1e-08
    %v349 = vadd.f32 %v341, 1e-08
    %v350 = vrsqrt.pop %v342
    %v351 = vrsqrt.pop %v343
    %v352 = vrsqrt.pop %v344
    %v353 = vrsqrt.pop %v345
    %v354 = vrsqrt.pop %v346
    %v355 = vrsqrt.pop %v347
    %v356 = vrsqrt.pop %v348
    %v357 = vrsqrt.pop %v349
    %v358 = vmul.f32 %v279, %v350
    %v359 = vmul.f32 %v282, %v351
    %v360 = vmul.f32 %v287, %v352
    %v361 = vmul.f32 %v290, %v353
    %v362 = vmul.f32 %v295, %v354
    %v363 = vmul.f32 %v298, %v355
    %v364 = vmul.f32 %v303, %v356
    %v365 = vmul.f32 %v306, %v357
    %v366 = vld [vmem:[%s3] sm:$0x1]
    %v368 = vlaneseq
    %v369 = vshrl.u32 %v368, 7
    %v370 = vsub.s32 0, %v369
    %v371 = vrot.slane %v366, %v370
    %v373 = vmul.f32 %v371, %v358
    %v374 = vmul.f32 %v371, %v359
    %v375 = vmul.f32 %v371, %v360
    %v376 = vmul.f32 %v371, %v361
    %v377 = vmul.f32 %v371, %v362
    %v378 = vmul.f32 %v371, %v363
    %v379 = vmul.f32 %v371, %v364
    %v380 = vmul.f32 %v371, %v365
    %381 = vst [vmem:[#allocation8] sm:$0xff] %v373
    %382 = vst [vmem:[#allocation8 + $0x8] sm:$0xff] %v374
    %383 = vst [vmem:[#allocation8 + $0x10] sm:$0xff] %v375
    %384 = vst [vmem:[#allocation8 + $0x18] sm:$0xff] %v376
    %385 = vst [vmem:[#allocation8 + $0x20] sm:$0xff] %v377
    %386 = vst [vmem:[#allocation8 + $0x28] sm:$0xff] %v378
    %387 = vst [vmem:[#allocation8 + $0x30] sm:$0xff] %v379
    %388 = vst [vmem:[#allocation8 + $0x38] sm:$0xff] %v380
    // Predicated region
    $region30: #{tpu_custom_call.1} parent=1 // pred_check
      _
    $region31: #{tpu_custom_call.1} parent=1 // pred_check_branch
      %390 = sbr.rel (0) target = $region33
    $region32: #{tpu_custom_call.1} parent=1 // pred_region
      %s392 = ssub.s32 1024, 640
      %393 = vsyncadd [#allocation4], %s392
      %s394 = sshll.u32 [#allocation8], 4
      %s395 = int_to_ptr.vmem [resolvable:$true] %s394
      %400 = dma.vmem_to_hbm [thread:$0]  %s395, 640, %s4, [#allocation4], 128, 128, 8
    $region33: #{tpu_custom_call.1} parent=1 // pred_fallthru
      _
    // Predicated region
    $region34: #{tpu_custom_call.1} parent=1 // pred_check
      _
    $region35: #{tpu_custom_call.1} parent=1 // pred_check_branch
      %402 = sbr.rel (0) target = $region37
    $region36: #{tpu_custom_call.1} parent=1 // pred_region
      %403 = dma.done [#allocation4], 1024
    $region37: #{tpu_custom_call.1} parent=1 // pred_fallthru
      _
    %404 = vsyncpa [#allocation3], 1
    %405 = vsyncpa [#allocation6], 1
    %406 = vsyncpa [#allocation4], 1

</llo_original>
